<compile_context>
chip_gen: v7x
topology: tpu7x:2x2x1
jax: 0.10.0
libtpu: 0.0.40
codegen_flags: <defaults>
</compile_context>

<pallas_src>
import jax
import jax.numpy as jnp
from jax import lax
from jax.experimental import pallas as pl
from jax.experimental.pallas import tpu as pltpu

EPS = 1e-5
HIDDEN = (128, 64, 32, 16)


# ---------------------------------------------------------------------------
# Kernel
# ---------------------------------------------------------------------------
def _bn_relu(y, b, g, beta, inv_n):
    """Training-mode BatchNorm1d (+ preceding Linear bias) + ReLU, all f32.

    Single-pass stats: mean = sum/N, var = sumsq/N - mean^2 (biased), then
    folded scale/shift so the normalize is a single multiply-add per element.
    """
    y = y + b
    s = jnp.sum(y, axis=0, keepdims=True)
    ss = jnp.sum(y * y, axis=0, keepdims=True)
    mean = s * inv_n
    var = ss * inv_n - mean * mean
    scale = g * lax.rsqrt(var + EPS)
    shift = beta - mean * scale
    return jnp.maximum(y * scale + shift, 0.0)


def mlp_kernel(x_ref, w1_ref, wp_ref, vp_ref, o_ref):
    # x_ref : (B, D)          f32
    # w1_ref: (D, 128)        bf16
    # wp_ref: (3, 128, 128)   bf16   zero-padded W2, W3, W4 (stored as (in,out))
    # vp_ref: (5, 8, 128)     f32    [layer, {0:bias,1:gamma,2:beta}, feat]
    #                                row 4: [0,0]=b5, [1,:16]=W5^T
    batch = x_ref.shape[0]
    inv_n = 1.0 / batch

    h = x_ref[...]  # f32, stays f32 for all elementwise math

    # ---- Layer 1: Linear(D,128) + BN + ReLU (bf16 operands, f32 accumulate)
    y = jnp.dot(h.astype(jnp.bfloat16), w1_ref[...],
                preferred_element_type=jnp.float32)
    h = _bn_relu(y,
                 vp_ref[0, 0:1, :128],
                 vp_ref[0, 1:2, :128],
                 vp_ref[0, 2:3, :128],
                 inv_n)

    # ---- Layers 2-4: Linear + BN + ReLU from the packed weight buffer
    in_dims = (128, 64, 32)
    out_dims = (64, 32, 16)
    for i in range(3):
        w = wp_ref[i, :in_dims[i], :out_dims[i]]        # static slice, bf16
        y = jnp.dot(h.astype(jnp.bfloat16), w,
                    preferred_element_type=jnp.float32)
        h = _bn_relu(y,
                     vp_ref[i + 1, 0:1, :out_dims[i]],
                     vp_ref[i + 1, 1:2, :out_dims[i]],
                     vp_ref[i + 1, 2:3, :out_dims[i]],
                     inv_n)

    # ---- Final Linear(16,1) + ReLU on the VPU (skip a K=16,N=1 MXU matmul)
    w5_row = vp_ref[4, 1:2, :16]      # (1, 16) f32
    b5 = vp_ref[4, 0:1, 0:1]          # (1, 1)  f32
    y = jnp.sum(h * w5_row, axis=-1, keepdims=True) + b5
    o_ref[...] = jnp.maximum(y, 0.0).astype(o_ref.dtype)


# ---------------------------------------------------------------------------
# Wrapper
# ---------------------------------------------------------------------------
@jax.jit
def mlp_forward(x, w1, wpack, vpack):
    batch, d = x.shape

    # Actual resident bytes (+ generous slack), clamped well under v7x's 64 MiB.
    buf_bytes = (x.size * 4 + w1.size * 2 + wpack.size * 2
                 + vpack.size * 4 + batch * 4)
    act_bytes = batch * 128 * 4 * 8          # f32 activations / temporaries
    vmem_limit = int(min(max(2 * (buf_bytes + act_bytes), 8 * 1024 * 1024),
                         48 * 1024 * 1024))

    flops = 2 * batch * (d * 128 + 128 * 64 + 64 * 32 + 32 * 16 + 16 * 1)
    cost = pl.CostEstimate(flops=flops, transcendentals=240,
                           bytes_accessed=int(buf_bytes))

    vmem_spec = pl.BlockSpec(memory_space=pltpu.MemorySpace.VMEM)
    return pl.pallas_call(
        mlp_kernel,
        out_shape=jax.ShapeDtypeStruct((batch, 1), jnp.float32),
        in_specs=[vmem_spec] * 4,
        out_specs=vmem_spec,
        compiler_params=pltpu.CompilerParams(vmem_limit_bytes=vmem_limit),
        cost_estimate=cost,
    )(x, w1, wpack, vpack)


# ---------------------------------------------------------------------------
# Parameters: PyTorch-style init + packing into the 3 kernel buffers
# ---------------------------------------------------------------------------
def init_params(key, input_dim):
    """Deterministic PyTorch-style init. Weights stored as (in, out)."""
    dims = [input_dim, 128, 64, 32, 16, 1]
    params = []
    for i in range(5):
        fan_in, fan_out = dims[i], dims[i + 1]
        key, kw, kb = jax.random.split(key, 3)
        bound = 1.0 / (fan_in ** 0.5)
        w = jax.random.uniform(kw, (fan_in, fan_out), jnp.float32, -bound, bound)
        b = jax.random.uniform(kb, (fan_out,), jnp.float32, -bound, bound)
        if i < 4:  # layers followed by BatchNorm1d
            gamma = jnp.ones((fan_out,), jnp.float32)
            beta = jnp.zeros((fan_out,), jnp.float32)
            params.append((w, b, gamma, beta))
        else:
            params.append((w, b))
    return params


def pack_params(params):
    """Pack parameters into the 3 kernel inputs (cuts 18 tiny DMAs to 3)."""
    # W1 stays separate (its row count is input_dim-dependent); bf16 operands.
    w1 = params[0][0].astype(jnp.bfloat16)

    # W2..W4 zero-padded into one (3,128,128) bf16 stack.
    wpack = jnp.zeros((3, 128, 128), jnp.bfloat16)
    for i in range(3):
        w = params[i + 1][0]
        wpack = wpack.at[i, :w.shape[0], :w.shape[1]].set(w.astype(jnp.bfloat16))

    # All small vectors in one (5,8,128) f32 buffer (f32: BN math stays f32).
    vpack = jnp.zeros((5, 8, 128), jnp.float32)
    for i in range(4):
        _, b, g, be = params[i]
        n = b.shape[0]
        vpack = vpack.at[i, 0, :n].set(b)
        vpack = vpack.at[i, 1, :n].set(g)
        vpack = vpack.at[i, 2, :n].set(be)
    w5, b5 = params[4]
    vpack = vpack.at[4, 0, 0].set(b5[0])
    vpack = vpack.at[4, 1, :16].set(w5[:, 0])
    return w1, wpack, vpack


# ---------------------------------------------------------------------------
# Reference
# ---------------------------------------------------------------------------
def reference_forward(x, params):
    """Pure-JAX reference of the PyTorch forward (training-mode BN).

    Uses the same bf16-operand / f32-accumulate MXU matmuls as the kernel
    (standard TPU practice); all BatchNorm math in f32, biased variance,
    eps=1e-5 — i.e. PyTorch BatchNorm1d training-mode semantics.
    """
    h = x.astype(jnp.float32)
    for i in range(4):
        w, b, g, be = params[i]
        y = jnp.dot(h.astype(jnp.bfloat16), w.astype(jnp.bfloat16),
                    preferred_element_type=jnp.float32) + b
        inv_n = 1.0 / y.shape[0]
        mean = jnp.sum(y, axis=0, keepdims=True) * inv_n
        var = jnp.sum(y * y, axis=0, keepdims=True) * inv_n - mean * mean
        scale = g * lax.rsqrt(var + EPS)
        shift = be - mean * scale
        h = jnp.maximum(y * scale + shift, 0.0)
    w5, b5 = params[4]
    y = jnp.sum(h * w5[:, 0][None, :], axis=-1, keepdims=True) + b5
    return jnp.maximum(y, 0.0)


if __name__ == "__main__":
    key = jax.random.PRNGKey(0)
    k_x, k_p = jax.random.split(key)

    batch, input_dim = 8, 32
    x = jax.random.normal(k_x, (batch, input_dim), jnp.float32)
    params = init_params(k_p, input_dim)
    w1, wpack, vpack = pack_params(params)

    out = mlp_forward(x, w1, wpack, vpack)
    out = jax.block_until_ready(out)

    ref = reference_forward(x, params)
    assert out.shape == (batch, 1)
    assert jnp.allclose(out, ref, atol=2e-3, rtol=2e-3), "mismatch vs reference"

    print("KERNEL_OK")
</pallas_src>

<mosaic_0001>
module attributes {stable_mosaic.version = 11 : i64} {
  func.func @mlp_kernel(%arg0: memref<8x32xf32, #tpu.memory_space<vmem>>, %arg1: memref<32x128xbf16, #tpu.memory_space<vmem>>, %arg2: memref<3x128x128xbf16, #tpu.memory_space<vmem>>, %arg3: memref<5x8x128xf32, #tpu.memory_space<vmem>>, %arg4: memref<8x1xf32, #tpu.memory_space<vmem>>) attributes {dimension_semantics = [], scalar_prefetch = 0 : i64, scratch_operands = 0 : i64, tpu.core_type = #tpu.core_type<tc>} {
    %c0 = arith.constant 0 : index
    %c0_0 = arith.constant 0 : index
    %0 = vector.load %arg0[%c0, %c0_0] : memref<8x32xf32, #tpu.memory_space<vmem>>, vector<8x32xf32>
    %1 = arith.truncf %0 : vector<8x32xf32> to vector<8x32xbf16>
    %c0_1 = arith.constant 0 : index
    %c0_2 = arith.constant 0 : index
    %2 = vector.load %arg1[%c0_1, %c0_2] : memref<32x128xbf16, #tpu.memory_space<vmem>>, vector<32x128xbf16>
    %cst = arith.constant dense<0.000000e+00> : vector<8x128xf32>
    %3 = tpu.matmul %1, %2, %cst {dimension_numbers = #tpu.dot_dimension_numbers<[1], [0], [0], [1], [0, 0, 1, 1], [], []>} : vector<8x32xbf16>, vector<32x128xbf16>, vector<8x128xf32> -> vector<8x128xf32>
    %c0_3 = arith.constant 0 : index
    %c0_4 = arith.constant 0 : index
    %c0_5 = arith.constant 0 : index
    %4 = vector.load %arg3[%c0_3, %c0_4, %c0_5] : memref<5x8x128xf32, #tpu.memory_space<vmem>>, vector<1x1x128xf32>
    %5 = vector.shape_cast %4 : vector<1x1x128xf32> to vector<1x128xf32>
    %c0_6 = arith.constant 0 : index
    %c1 = arith.constant 1 : index
    %c0_7 = arith.constant 0 : index
    %6 = vector.load %arg3[%c0_6, %c1, %c0_7] : memref<5x8x128xf32, #tpu.memory_space<vmem>>, vector<1x1x128xf32>
    %7 = vector.shape_cast %6 : vector<1x1x128xf32> to vector<1x128xf32>
    %c0_8 = arith.constant 0 : index
    %c2 = arith.constant 2 : index
    %c0_9 = arith.constant 0 : index
    %8 = vector.load %arg3[%c0_8, %c2, %c0_9] : memref<5x8x128xf32, #tpu.memory_space<vmem>>, vector<1x1x128xf32>
    %9 = vector.shape_cast %8 : vector<1x1x128xf32> to vector<1x128xf32>
    %10 = vector.broadcast %5 : vector<1x128xf32> to vector<8x128xf32>
    %11 = arith.addf %3, %10 : vector<8x128xf32>
    %cst_10 = arith.constant dense<0.000000e+00> : vector<128xf32>
    %12 = vector.multi_reduction <add>, %11, %cst_10 [0] : vector<8x128xf32> to vector<128xf32>
    %13 = vector.shape_cast %12 : vector<128xf32> to vector<1x128xf32>
    %14 = arith.mulf %11, %11 : vector<8x128xf32>
    %cst_11 = arith.constant dense<0.000000e+00> : vector<128xf32>
    %15 = vector.multi_reduction <add>, %14, %cst_11 [0] : vector<8x128xf32> to vector<128xf32>
    %16 = vector.shape_cast %15 : vector<128xf32> to vector<1x128xf32>
    %cst_12 = arith.constant 1.250000e-01 : f32
    %17 = vector.broadcast %cst_12 : f32 to vector<1x128xf32>
    %18 = arith.mulf %13, %17 : vector<1x128xf32>
    %cst_13 = arith.constant 1.250000e-01 : f32
    %19 = vector.broadcast %cst_13 : f32 to vector<1x128xf32>
    %20 = arith.mulf %16, %19 : vector<1x128xf32>
    %21 = arith.mulf %18, %18 : vector<1x128xf32>
    %22 = arith.subf %20, %21 : vector<1x128xf32>
    %cst_14 = arith.constant 9.99999974E-6 : f32
    %23 = vector.broadcast %cst_14 : f32 to vector<1x128xf32>
    %24 = arith.addf %22, %23 : vector<1x128xf32>
    %25 = math.rsqrt %24 : vector<1x128xf32>
    %26 = arith.mulf %7, %25 : vector<1x128xf32>
    %27 = arith.mulf %18, %26 : vector<1x128xf32>
    %28 = arith.subf %9, %27 : vector<1x128xf32>
    %29 = vector.broadcast %26 : vector<1x128xf32> to vector<8x128xf32>
    %30 = arith.mulf %11, %29 : vector<8x128xf32>
    %31 = vector.broadcast %28 : vector<1x128xf32> to vector<8x128xf32>
    %32 = arith.addf %30, %31 : vector<8x128xf32>
    %cst_15 = arith.constant 0.000000e+00 : f32
    %33 = vector.broadcast %cst_15 : f32 to vector<8x128xf32>
    %34 = arith.maximumf %32, %33 : vector<8x128xf32>
    %c0_16 = arith.constant 0 : index
    %c0_17 = arith.constant 0 : index
    %c0_18 = arith.constant 0 : index
    %35 = vector.load %arg2[%c0_16, %c0_17, %c0_18] : memref<3x128x128xbf16, #tpu.memory_space<vmem>>, vector<1x128x64xbf16>
    %36 = vector.shape_cast %35 : vector<1x128x64xbf16> to vector<128x64xbf16>
    %37 = arith.truncf %34 : vector<8x128xf32> to vector<8x128xbf16>
    %cst_19 = arith.constant dense<0.000000e+00> : vector<8x64xf32>
    %38 = tpu.matmul %37, %36, %cst_19 {dimension_numbers = #tpu.dot_dimension_numbers<[1], [0], [0], [1], [0, 0, 1, 1], [], []>} : vector<8x128xbf16>, vector<128x64xbf16>, vector<8x64xf32> -> vector<8x64xf32>
    %c1_20 = arith.constant 1 : index
    %c0_21 = arith.constant 0 : index
    %c0_22 = arith.constant 0 : index
    %39 = vector.load %arg3[%c1_20, %c0_21, %c0_22] : memref<5x8x128xf32, #tpu.memory_space<vmem>>, vector<1x1x64xf32>
    %40 = vector.shape_cast %39 : vector<1x1x64xf32> to vector<1x64xf32>
    %c1_23 = arith.constant 1 : index
    %c1_24 = arith.constant 1 : index
    %c0_25 = arith.constant 0 : index
    %41 = vector.load %arg3[%c1_23, %c1_24, %c0_25] : memref<5x8x128xf32, #tpu.memory_space<vmem>>, vector<1x1x64xf32>
    %42 = vector.shape_cast %41 : vector<1x1x64xf32> to vector<1x64xf32>
    %c1_26 = arith.constant 1 : index
    %c2_27 = arith.constant 2 : index
    %c0_28 = arith.constant 0 : index
    %43 = vector.load %arg3[%c1_26, %c2_27, %c0_28] : memref<5x8x128xf32, #tpu.memory_space<vmem>>, vector<1x1x64xf32>
    %44 = vector.shape_cast %43 : vector<1x1x64xf32> to vector<1x64xf32>
    %45 = vector.broadcast %40 : vector<1x64xf32> to vector<8x64xf32>
    %46 = arith.addf %38, %45 : vector<8x64xf32>
    %cst_29 = arith.constant dense<0.000000e+00> : vector<64xf32>
    %47 = vector.multi_reduction <add>, %46, %cst_29 [0] : vector<8x64xf32> to vector<64xf32>
    %48 = vector.shape_cast %47 : vector<64xf32> to vector<1x64xf32>
    %49 = arith.mulf %46, %46 : vector<8x64xf32>
    %cst_30 = arith.constant dense<0.000000e+00> : vector<64xf32>
    %50 = vector.multi_reduction <add>, %49, %cst_30 [0] : vector<8x64xf32> to vector<64xf32>
    %51 = vector.shape_cast %50 : vector<64xf32> to vector<1x64xf32>
    %cst_31 = arith.constant 1.250000e-01 : f32
    %52 = vector.broadcast %cst_31 : f32 to vector<1x64xf32>
    %53 = arith.mulf %48, %52 : vector<1x64xf32>
    %cst_32 = arith.constant 1.250000e-01 : f32
    %54 = vector.broadcast %cst_32 : f32 to vector<1x64xf32>
    %55 = arith.mulf %51, %54 : vector<1x64xf32>
    %56 = arith.mulf %53, %53 : vector<1x64xf32>
    %57 = arith.subf %55, %56 : vector<1x64xf32>
    %cst_33 = arith.constant 9.99999974E-6 : f32
    %58 = vector.broadcast %cst_33 : f32 to vector<1x64xf32>
    %59 = arith.addf %57, %58 : vector<1x64xf32>
    %60 = math.rsqrt %59 : vector<1x64xf32>
    %61 = arith.mulf %42, %60 : vector<1x64xf32>
    %62 = arith.mulf %53, %61 : vector<1x64xf32>
    %63 = arith.subf %44, %62 : vector<1x64xf32>
    %64 = vector.broadcast %61 : vector<1x64xf32> to vector<8x64xf32>
    %65 = arith.mulf %46, %64 : vector<8x64xf32>
    %66 = vector.broadcast %63 : vector<1x64xf32> to vector<8x64xf32>
    %67 = arith.addf %65, %66 : vector<8x64xf32>
    %cst_34 = arith.constant 0.000000e+00 : f32
    %68 = vector.broadcast %cst_34 : f32 to vector<8x64xf32>
    %69 = arith.maximumf %67, %68 : vector<8x64xf32>
    %c1_35 = arith.constant 1 : index
    %c0_36 = arith.constant 0 : index
    %c0_37 = arith.constant 0 : index
    %70 = vector.load %arg2[%c1_35, %c0_36, %c0_37] : memref<3x128x128xbf16, #tpu.memory_space<vmem>>, vector<1x64x32xbf16>
    %71 = vector.shape_cast %70 : vector<1x64x32xbf16> to vector<64x32xbf16>
    %72 = arith.truncf %69 : vector<8x64xf32> to vector<8x64xbf16>
    %cst_38 = arith.constant dense<0.000000e+00> : vector<8x32xf32>
    %73 = tpu.matmul %72, %71, %cst_38 {dimension_numbers = #tpu.dot_dimension_numbers<[1], [0], [0], [1], [0, 0, 1, 1], [], []>} : vector<8x64xbf16>, vector<64x32xbf16>, vector<8x32xf32> -> vector<8x32xf32>
    %c2_39 = arith.constant 2 : index
    %c0_40 = arith.constant 0 : index
    %c0_41 = arith.constant 0 : index
    %74 = vector.load %arg3[%c2_39, %c0_40, %c0_41] : memref<5x8x128xf32, #tpu.memory_space<vmem>>, vector<1x1x32xf32>
    %75 = vector.shape_cast %74 : vector<1x1x32xf32> to vector<1x32xf32>
    %c2_42 = arith.constant 2 : index
    %c1_43 = arith.constant 1 : index
    %c0_44 = arith.constant 0 : index
    %76 = vector.load %arg3[%c2_42, %c1_43, %c0_44] : memref<5x8x128xf32, #tpu.memory_space<vmem>>, vector<1x1x32xf32>
    %77 = vector.shape_cast %76 : vector<1x1x32xf32> to vector<1x32xf32>
    %c2_45 = arith.constant 2 : index
    %c2_46 = arith.constant 2 : index
    %c0_47 = arith.constant 0 : index
    %78 = vector.load %arg3[%c2_45, %c2_46, %c0_47] : memref<5x8x128xf32, #tpu.memory_space<vmem>>, vector<1x1x32xf32>
    %79 = vector.shape_cast %78 : vector<1x1x32xf32> to vector<1x32xf32>
    %80 = vector.broadcast %75 : vector<1x32xf32> to vector<8x32xf32>
    %81 = arith.addf %73, %80 : vector<8x32xf32>
    %cst_48 = arith.constant dense<0.000000e+00> : vector<32xf32>
    %82 = vector.multi_reduction <add>, %81, %cst_48 [0] : vector<8x32xf32> to vector<32xf32>
    %83 = vector.shape_cast %82 : vector<32xf32> to vector<1x32xf32>
    %84 = arith.mulf %81, %81 : vector<8x32xf32>
    %cst_49 = arith.constant dense<0.000000e+00> : vector<32xf32>
    %85 = vector.multi_reduction <add>, %84, %cst_49 [0] : vector<8x32xf32> to vector<32xf32>
    %86 = vector.shape_cast %85 : vector<32xf32> to vector<1x32xf32>
    %cst_50 = arith.constant 1.250000e-01 : f32
    %87 = vector.broadcast %cst_50 : f32 to vector<1x32xf32>
    %88 = arith.mulf %83, %87 : vector<1x32xf32>
    %cst_51 = arith.constant 1.250000e-01 : f32
    %89 = vector.broadcast %cst_51 : f32 to vector<1x32xf32>
    %90 = arith.mulf %86, %89 : vector<1x32xf32>
    %91 = arith.mulf %88, %88 : vector<1x32xf32>
    %92 = arith.subf %90, %91 : vector<1x32xf32>
    %cst_52 = arith.constant 9.99999974E-6 : f32
    %93 = vector.broadcast %cst_52 : f32 to vector<1x32xf32>
    %94 = arith.addf %92, %93 : vector<1x32xf32>
    %95 = math.rsqrt %94 : vector<1x32xf32>
    %96 = arith.mulf %77, %95 : vector<1x32xf32>
    %97 = arith.mulf %88, %96 : vector<1x32xf32>
    %98 = arith.subf %79, %97 : vector<1x32xf32>
    %99 = vector.broadcast %96 : vector<1x32xf32> to vector<8x32xf32>
    %100 = arith.mulf %81, %99 : vector<8x32xf32>
    %101 = vector.broadcast %98 : vector<1x32xf32> to vector<8x32xf32>
    %102 = arith.addf %100, %101 : vector<8x32xf32>
    %cst_53 = arith.constant 0.000000e+00 : f32
    %103 = vector.broadcast %cst_53 : f32 to vector<8x32xf32>
    %104 = arith.maximumf %102, %103 : vector<8x32xf32>
    %c2_54 = arith.constant 2 : index
    %c0_55 = arith.constant 0 : index
    %c0_56 = arith.constant 0 : index
    %105 = vector.load %arg2[%c2_54, %c0_55, %c0_56] : memref<3x128x128xbf16, #tpu.memory_space<vmem>>, vector<1x32x16xbf16>
    %106 = vector.shape_cast %105 : vector<1x32x16xbf16> to vector<32x16xbf16>
    %107 = arith.truncf %104 : vector<8x32xf32> to vector<8x32xbf16>
    %cst_57 = arith.constant dense<0.000000e+00> : vector<8x16xf32>
    %108 = tpu.matmul %107, %106, %cst_57 {dimension_numbers = #tpu.dot_dimension_numbers<[1], [0], [0], [1], [0, 0, 1, 1], [], []>} : vector<8x32xbf16>, vector<32x16xbf16>, vector<8x16xf32> -> vector<8x16xf32>
    %c3 = arith.constant 3 : index
    %c0_58 = arith.constant 0 : index
    %c0_59 = arith.constant 0 : index
    %109 = vector.load %arg3[%c3, %c0_58, %c0_59] : memref<5x8x128xf32, #tpu.memory_space<vmem>>, vector<1x1x16xf32>
    %110 = vector.shape_cast %109 : vector<1x1x16xf32> to vector<1x16xf32>
    %c3_60 = arith.constant 3 : index
    %c1_61 = arith.constant 1 : index
    %c0_62 = arith.constant 0 : index
    %111 = vector.load %arg3[%c3_60, %c1_61, %c0_62] : memref<5x8x128xf32, #tpu.memory_space<vmem>>, vector<1x1x16xf32>
    %112 = vector.shape_cast %111 : vector<1x1x16xf32> to vector<1x16xf32>
    %c3_63 = arith.constant 3 : index
    %c2_64 = arith.constant 2 : index
    %c0_65 = arith.constant 0 : index
    %113 = vector.load %arg3[%c3_63, %c2_64, %c0_65] : memref<5x8x128xf32, #tpu.memory_space<vmem>>, vector<1x1x16xf32>
    %114 = vector.shape_cast %113 : vector<1x1x16xf32> to vector<1x16xf32>
    %115 = vector.broadcast %110 : vector<1x16xf32> to vector<8x16xf32>
    %116 = arith.addf %108, %115 : vector<8x16xf32>
    %cst_66 = arith.constant dense<0.000000e+00> : vector<16xf32>
    %117 = vector.multi_reduction <add>, %116, %cst_66 [0] : vector<8x16xf32> to vector<16xf32>
    %118 = vector.shape_cast %117 : vector<16xf32> to vector<1x16xf32>
    %119 = arith.mulf %116, %116 : vector<8x16xf32>
    %cst_67 = arith.constant dense<0.000000e+00> : vector<16xf32>
    %120 = vector.multi_reduction <add>, %119, %cst_67 [0] : vector<8x16xf32> to vector<16xf32>
    %121 = vector.shape_cast %120 : vector<16xf32> to vector<1x16xf32>
    %cst_68 = arith.constant 1.250000e-01 : f32
    %122 = vector.broadcast %cst_68 : f32 to vector<1x16xf32>
    %123 = arith.mulf %118, %122 : vector<1x16xf32>
    %cst_69 = arith.constant 1.250000e-01 : f32
    %124 = vector.broadcast %cst_69 : f32 to vector<1x16xf32>
    %125 = arith.mulf %121, %124 : vector<1x16xf32>
    %126 = arith.mulf %123, %123 : vector<1x16xf32>
    %127 = arith.subf %125, %126 : vector<1x16xf32>
    %cst_70 = arith.constant 9.99999974E-6 : f32
    %128 = vector.broadcast %cst_70 : f32 to vector<1x16xf32>
    %129 = arith.addf %127, %128 : vector<1x16xf32>
    %130 = math.rsqrt %129 : vector<1x16xf32>
    %131 = arith.mulf %112, %130 : vector<1x16xf32>
    %132 = arith.mulf %123, %131 : vector<1x16xf32>
    %133 = arith.subf %114, %132 : vector<1x16xf32>
    %134 = vector.broadcast %131 : vector<1x16xf32> to vector<8x16xf32>
    %135 = arith.mulf %116, %134 : vector<8x16xf32>
    %136 = vector.broadcast %133 : vector<1x16xf32> to vector<8x16xf32>
    %137 = arith.addf %135, %136 : vector<8x16xf32>
    %cst_71 = arith.constant 0.000000e+00 : f32
    %138 = vector.broadcast %cst_71 : f32 to vector<8x16xf32>
    %139 = arith.maximumf %137, %138 : vector<8x16xf32>
    %c4 = arith.constant 4 : index
    %c1_72 = arith.constant 1 : index
    %c0_73 = arith.constant 0 : index
    %140 = vector.load %arg3[%c4, %c1_72, %c0_73] : memref<5x8x128xf32, #tpu.memory_space<vmem>>, vector<1x1x16xf32>
    %141 = vector.shape_cast %140 : vector<1x1x16xf32> to vector<1x16xf32>
    %c4_74 = arith.constant 4 : index
    %c0_75 = arith.constant 0 : index
    %c0_76 = arith.constant 0 : index
    %142 = vector.load %arg3[%c4_74, %c0_75, %c0_76] : memref<5x8x128xf32, #tpu.memory_space<vmem>>, vector<1x1x1xf32>
    %143 = vector.shape_cast %142 : vector<1x1x1xf32> to vector<1x1xf32>
    %144 = vector.broadcast %141 : vector<1x16xf32> to vector<8x16xf32>
    %145 = arith.mulf %139, %144 : vector<8x16xf32>
    %cst_77 = arith.constant dense<0.000000e+00> : vector<8xf32>
    %146 = vector.multi_reduction <add>, %145, %cst_77 [1] : vector<8x16xf32> to vector<8xf32>
    %147 = vector.shape_cast %146 : vector<8xf32> to vector<8x1xf32>
    %148 = vector.broadcast %143 : vector<1x1xf32> to vector<8x1xf32>
    %149 = arith.addf %147, %148 : vector<8x1xf32>
    %cst_78 = arith.constant 0.000000e+00 : f32
    %150 = vector.broadcast %cst_78 : f32 to vector<8x1xf32>
    %151 = arith.maximumf %149, %150 : vector<8x1xf32>
    %c0_79 = arith.constant 0 : index
    %c0_80 = arith.constant 0 : index
    %152 = vector.load %arg4[%c0_79, %c0_80] : memref<8x1xf32, #tpu.memory_space<vmem>>, vector<8x1xf32>
    tpu.vector_store %arg4[%c0_79, %c0_80], %151 {strides = array<i32>} : memref<8x1xf32, #tpu.memory_space<vmem>>, vector<8x1xf32>,
    return
  }
}

</mosaic_0001>

<llo_original>
// kernel: mlp_forward.1
$region0: #{mlp_forward.1}
  #allocation0 [shape = 'u32[]', space=smem, size = 0x4, offset = 0x4, fixed_abs, tag = 'smem constant byte address 0x4 - core index']
  #allocation1 [shape = 'u32[144,128]{1,0:T(1,128)}', space=vmem, size = 0x12000, scoped, tag = 'internal scratch']
  %s0 = inlined_call_operand.hbm [shape: f32[8,32], index: 0, kind: input, shape index: {}]
  %s1 = inlined_call_operand.hbm [shape: bf16[32,128], index: 1, kind: input, shape index: {}]
  %s2 = inlined_call_operand.hbm [shape: bf16[3,128,128], index: 2, kind: input, shape index: {}]
  %s3 = inlined_call_operand.hbm [shape: f32[5,8,128], index: 3, kind: input, shape index: {}]
  %s4 = inlined_call_operand.vmem [shape: f32[8,1], index: 4, kind: output, shape index: {}]
  %s5 = sld [smem:[#allocation0]]
  $region42: #{mlp_forward.1} parent=0
    _
  %s7 = ssub.s32 1, %s5
  %s8 = scalar_select 0, %s7, %s5
  $region1: #{mlp_forward.1} parent=0
    #allocation2 [shape = 'u8[4096]{0}', space=vmem, size = 0x1000, scoped, tag = 'input window, operand 0, single buffered']
    #allocation3 [shape = 's32[1]{0}', space=sflag, size = 0x4, scoped, tag = 'scoped memory for mlp_forward.1']
    #allocation4 [shape = 'u8[8192]{0}', space=vmem, size = 0x2000, scoped, tag = 'input window, operand 1, single buffered']
    #allocation5 [shape = 's32[1]{0}', space=sflag, size = 0x4, scoped, tag = 'scoped memory for mlp_forward.1']
    #allocation6 [shape = 'u8[98304]{0}', space=vmem, size = 0x18000, scoped, tag = 'input window, operand 2, single buffered']
    #allocation7 [shape = 'u8[20480]{0}', space=vmem, size = 0x5000, scoped, tag = 'input window, operand 3, single buffered']
    #allocation8 [shape = 's32[1]{0}', space=sflag, size = 0x4, scoped, tag = 'scoped memory for mlp_forward.1']
    %9 = vsyncpa [#allocation3], 0
    %10 = vsyncpa [#allocation5], 0
    %11 = vsyncpa [#allocation8], 0
    // Predicated region
    $region2: #{mlp_forward.1} parent=1 // pred_check
      _
    $region3: #{mlp_forward.1} parent=1 // pred_check_branch
      %13 = sbr.rel (0) target = $region5
    $region4: #{mlp_forward.1} parent=1 // pred_region
      %s15 = ssub.s32 128, 128
      %16 = vsyncadd [#allocation3], %s15
      %s18 = sshll.u32 [#allocation2], 4
      %s19 = int_to_ptr.vmem [resolvable:$true] %s18
      %21 = dma.hbm_to_vmem [thread:$0]  %s0, 128, %s19, [#allocation3]
    $region5: #{mlp_forward.1} parent=1 // pred_fallthru
      _
    // Predicated region
    $region6: #{mlp_forward.1} parent=1 // pred_check
      _
    $region7: #{mlp_forward.1} parent=1 // pred_check_branch
      %23 = sbr.rel (0) target = $region9
    $region8: #{mlp_forward.1} parent=1 // pred_region
      %s25 = ssub.s32 256, 256
      %26 = vsyncadd [#allocation5], %s25
      %s27 = sshll.u32 [#allocation4], 4
      %s28 = int_to_ptr.vmem [resolvable:$true] %s27
      %33 = dma.hbm_to_vmem [thread:$0]  %s1, 256, %s28, [#allocation5], 64, 64, 4
    $region9: #{mlp_forward.1} parent=1 // pred_fallthru
      _
    // Predicated region
    $region10: #{mlp_forward.1} parent=1 // pred_check
      _
    $region11: #{mlp_forward.1} parent=1 // pred_check_branch
      %35 = sbr.rel (0) target = $region13
    $region12: #{mlp_forward.1} parent=1 // pred_region
      %s37 = ssub.s32 3072, 3072
      %38 = vsyncadd [#allocation5], %s37
      %s39 = sshll.u32 [#allocation6], 4
      %s40 = int_to_ptr.vmem [resolvable:$true] %s39
      %45 = dma.hbm_to_vmem [thread:$0]  %s2, 3072, %s40, [#allocation5], 64, 64, 4
    $region13: #{mlp_forward.1} parent=1 // pred_fallthru
      _
    // Predicated region
    $region14: #{mlp_forward.1} parent=1 // pred_check
      _
    $region15: #{mlp_forward.1} parent=1 // pred_check_branch
      %47 = sbr.rel (0) target = $region17
    $region16: #{mlp_forward.1} parent=1 // pred_region
      %s49 = ssub.s32 640, 640
      %50 = vsyncadd [#allocation8], %s49
      %s51 = sshll.u32 [#allocation7], 4
      %s52 = int_to_ptr.vmem [resolvable:$true] %s51
      %57 = dma.hbm_to_vmem [thread:$0]  %s3, 640, %s52, [#allocation8], 128, 128, 8
    $region17: #{mlp_forward.1} parent=1 // pred_fallthru
      _
    // Predicated region
    $region18: #{mlp_forward.1} parent=1 // pred_check
      _
    $region19: #{mlp_forward.1} parent=1 // pred_check_branch
      %59 = sbr.rel (0) target = $region21
    $region20: #{mlp_forward.1} parent=1 // pred_region
      %60 = dma.done [#allocation3], 128
    $region21: #{mlp_forward.1} parent=1 // pred_fallthru
      _
    // Predicated region
    $region22: #{mlp_forward.1} parent=1 // pred_check
      _
    $region23: #{mlp_forward.1} parent=1 // pred_check_branch
      %62 = sbr.rel (0) target = $region25
    $region24: #{mlp_forward.1} parent=1 // pred_region
      %63 = dma.done [#allocation5], 256
    $region25: #{mlp_forward.1} parent=1 // pred_fallthru
      _
    // Predicated region
    $region26: #{mlp_forward.1} parent=1 // pred_check
      _
    $region27: #{mlp_forward.1} parent=1 // pred_check_branch
      %65 = sbr.rel (0) target = $region29
    $region28: #{mlp_forward.1} parent=1 // pred_region
      %66 = dma.done [#allocation5], 3072
    $region29: #{mlp_forward.1} parent=1 // pred_fallthru
      _
    // Predicated region
    $region30: #{mlp_forward.1} parent=1 // pred_check
      _
    $region31: #{mlp_forward.1} parent=1 // pred_check_branch
      %68 = sbr.rel (0) target = $region33
    $region32: #{mlp_forward.1} parent=1 // pred_region
      %69 = dma.done [#allocation8], 640
    $region33: #{mlp_forward.1} parent=1 // pred_fallthru
      _
    %v71 = vld [vmem:[#allocation2] sm:$0xff]
    %v72 = vpack.c.bf16 %v71, %v71
    %v73 = vld [vmem:[#allocation4] sm:$0xf]
    %v74 = vld [vmem:[#allocation4 + $0x4] sm:$0xf]
    %v75 = vld [vmem:[#allocation4 + $0x8] sm:$0xf]
    %v76 = vld [vmem:[#allocation4 + $0xc] sm:$0xf]
    %v77 = vld [vmem:[#allocation7] sm:$0x1]
    %v78 = vld [vmem:[#allocation7 + $0x1] sm:$0x1]
    %v79 = vld [vmem:[#allocation7 + $0x2] sm:$0x1]
    %v80 = vlaneseq
    %v81 = vshrl.u32 %v80, 7
    %v82 = vsub.s32 0, %v81
    %v83 = vrot.slane %v77, %v82
    %v88 = vunpack.c.l.b16 %v73
    %v89 = vunpack.c.l.b16 %v74
    %v90 = vunpack.c.l.b16 %v75
    %v91 = vunpack.c.l.b16 %v76
    %v92 = vpack.c.b16 %v89, %v88
    %v93 = vpack.c.b16 %v91, %v90
    %vm96 = vcmask 261120
    %v98 = vsel %vm96, %v72, 0
    %100 = vmatprep.subr.bf16.mxu0 0
    %101 = vmatpush1.bf16.msra.mxu0 %v92
    %102 = vmatprep.subr.bf16.mxu0 0
    %103 = vmatpush1.bf16.msra.mxu0 %v93
    %104 = vmatprep.subr.bf16.mxu0 0
    %105 = vmatpush1.bf16.msra.mxu0 0
    %106 = vmatprep.subr.bf16.mxu0 0
    %107 = vmatpush1.bf16.msra.mxu0 0
    %108 = vmatprep.subr.bf16.mxu0 0
    %109 = vmatpush1.bf16.msra.mxu0 0
    %110 = vmatprep.subr.bf16.mxu0 0
    %111 = vmatpush1.bf16.msra.mxu0 0
    %112 = vmatprep.subr.bf16.mxu0 0
    %113 = vmatpush1.bf16.msra.mxu0 0
    %114 = vmatprep.subr.bf16.mxu0 0
    %115 = vmatpush1.bf16.msra.mxu0 0
    %116 = vmatprep.subr.bf16.mxu0 0
    %117 = vmatpush1.bf16.msra.mxu0 0
    %118 = vmatprep.subr.bf16.mxu0 0
    %119 = vmatpush1.bf16.msra.mxu0 0
    %120 = vmatprep.subr.bf16.mxu0 0
    %121 = vmatpush1.bf16.msra.mxu0 0
    %122 = vmatprep.subr.bf16.mxu0 0
    %123 = vmatpush1.bf16.msra.mxu0 0
    %124 = vmatprep.subr.bf16.mxu0 0
    %125 = vmatpush1.bf16.msra.mxu0 0
    %126 = vmatprep.subr.bf16.mxu0 0
    %127 = vmatpush1.bf16.msra.mxu0 0
    %128 = vmatprep.subr.bf16.mxu0 0
    %129 = vmatpush1.bf16.msra.mxu0 0
    %130 = vmatprep.subr.bf16.mxu0 0
    %131 = vmatpush1.bf16.msra.mxu0 0
    %132 = vmatprep.mubr.bf16.mxu0 0
    %133 = vmatmul.mubr.bf16.gmra.mrb[0].mxu0 %v98
    %v134 = vpop.f32.mrb[0].mxu0
    %v135 = vadd.f32 %v83, %v134
    %v136 = vpop.f32.mrb[0].mxu0
    %v137 = vpop.f32.mrb[0].mxu0
    %v138 = vpop.f32.mrb[0].mxu0
    %139 = vdwg.mxu0
    %v140 = vrot.slane %v135, 4
    %v141 = vadd.f32 %v135, %v140
    %v142 = vrot.slane %v141, 2
    %v143 = vadd.f32 %v141, %v142
    %v144 = vrot.slane %v143, 1
    %v145 = vadd.f32 %v143, %v144
    %v146 = vmul.f32 %v135, %v135
    %v147 = vrot.slane %v146, 4
    %v148 = vadd.f32 %v146, %v147
    %v149 = vrot.slane %v148, 2
    %v150 = vadd.f32 %v148, %v149
    %v151 = vrot.slane %v150, 1
    %v152 = vadd.f32 %v150, %v151
    %v153 = vmul.f32 %v145, 0.125
    %v154 = vmul.f32 %v152, 0.125
    %v155 = vmul.f32 %v153, %v153
    %v156 = vsub.f32 %v154, %v155
    %v157 = vadd.f32 %v156, 1e-05
    %v158 = vrsqrt.pop %v157
    %v159 = vmul.f32 %v78, %v158
    %v160 = vmul.f32 %v153, %v159
    %v161 = vsub.f32 %v79, %v160
    %v162 = vlaneseq
    %v163 = vshrl.u32 %v162, 7
    %v164 = vsub.s32 0, %v163
    %v165 = vrot.slane %v159, %v164
    %v166 = vmul.f32 %v135, %v165
    %v167 = vlaneseq
    %v168 = vshrl.u32 %v167, 7
    %v169 = vsub.s32 0, %v168
    %v170 = vrot.slane %v161, %v169
    %v171 = vadd.f32 %v166, %v170
    %v172 = vmax.f32 %v171, 0.0
    %v173 = vld [vmem:[#allocation6] sm:$0xf]
    %v174 = vld [vmem:[#allocation6 + $0x4] sm:$0xf]
    %v175 = vld [vmem:[#allocation6 + $0x8] sm:$0xf]
    %v176 = vld [vmem:[#allocation6 + $0xc] sm:$0xf]
    %v177 = vld [vmem:[#allocation6 + $0x10] sm:$0xf]
    %v178 = vld [vmem:[#allocation6 + $0x14] sm:$0xf]
    %v179 = vld [vmem:[#allocation6 + $0x18] sm:$0xf]
    %v180 = vld [vmem:[#allocation6 + $0x1c] sm:$0xf]
    %v181 = vld [vmem:[#allocation6 + $0x20] sm:$0xf]
    %v182 = vld [vmem:[#allocation6 + $0x24] sm:$0xf]
    %v183 = vld [vmem:[#allocation6 + $0x28] sm:$0xf]
    %v184 = vld [vmem:[#allocation6 + $0x2c] sm:$0xf]
    %v185 = vld [vmem:[#allocation6 + $0x30] sm:$0xf]
    %v186 = vld [vmem:[#allocation6 + $0x34] sm:$0xf]
    %v187 = vld [vmem:[#allocation6 + $0x38] sm:$0xf]
    %v188 = vld [vmem:[#allocation6 + $0x3c] sm:$0xf]
    %v189 = vpack.c.bf16 %v172, %v172
    %s190 = scalar_lea.vmem [#allocation7], 8
    %v191 = vld [vmem:[%s190] sm:$0x1]
    %v192 = vld [vmem:[%s190 + $0x1] sm:$0x1]
    %v193 = vld [vmem:[%s190 + $0x2] sm:$0x1]
    %v194 = vlaneseq
    %v195 = vshrl.u32 %v194, 7
    %v196 = vsub.s32 0, %v195
    %v197 = vrot.slane %v191, %v196
    %v214 = vunpack.c.l.b16 %v173
    %v215 = vunpack.c.l.b16 %v174
    %v216 = vunpack.c.l.b16 %v175
    %v217 = vunpack.c.l.b16 %v176
    %v218 = vunpack.c.l.b16 %v177
    %v219 = vunpack.c.l.b16 %v178
    %v220 = vunpack.c.l.b16 %v179
    %v221 = vunpack.c.l.b16 %v180
    %v222 = vunpack.c.l.b16 %v181
    %v223 = vunpack.c.l.b16 %v182
    %v224 = vunpack.c.l.b16 %v183
    %v225 = vunpack.c.l.b16 %v184
    %v226 = vunpack.c.l.b16 %v185
    %v227 = vunpack.c.l.b16 %v186
    %v228 = vunpack.c.l.b16 %v187
    %v229 = vunpack.c.l.b16 %v188
    %v230 = vpack.c.b16 %v215, %v214
    %v231 = vpack.c.b16 %v217, %v216
    %v232 = vpack.c.b16 %v219, %v218
    %v233 = vpack.c.b16 %v221, %v220
    %v234 = vpack.c.b16 %v223, %v222
    %v235 = vpack.c.b16 %v225, %v224
    %v236 = vpack.c.b16 %v227, %v226
    %v237 = vpack.c.b16 %v229, %v228
    %246 = vmatprep.subr.bf16.mxu0 0
    %247 = vmatpush1.bf16.msra.mxu0 %v230
    %248 = vmatprep.subr.bf16.mxu0 0
    %249 = vmatpush1.bf16.msra.mxu0 %v231
    %250 = vmatprep.subr.bf16.mxu0 0
    %251 = vmatpush1.bf16.msra.mxu0 %v232
    %252 = vmatprep.subr.bf16.mxu0 0
    %253 = vmatpush1.bf16.msra.mxu0 %v233
    %254 = vmatprep.subr.bf16.mxu0 0
    %255 = vmatpush1.bf16.msra.mxu0 %v234
    %256 = vmatprep.subr.bf16.mxu0 0
    %257 = vmatpush1.bf16.msra.mxu0 %v235
    %258 = vmatprep.subr.bf16.mxu0 0
    %259 = vmatpush1.bf16.msra.mxu0 %v236
    %260 = vmatprep.subr.bf16.mxu0 0
    %261 = vmatpush1.bf16.msra.mxu0 %v237
    %262 = vmatprep.subr.bf16.mxu0 0
    %263 = vmatpush1.bf16.msra.mxu0 0
    %264 = vmatprep.subr.bf16.mxu0 0
    %265 = vmatpush1.bf16.msra.mxu0 0
    %266 = vmatprep.subr.bf16.mxu0 0
    %267 = vmatpush1.bf16.msra.mxu0 0
    %268 = vmatprep.subr.bf16.mxu0 0
    %269 = vmatpush1.bf16.msra.mxu0 0
    %270 = vmatprep.subr.bf16.mxu0 0
    %271 = vmatpush1.bf16.msra.mxu0 0
    %272 = vmatprep.subr.bf16.mxu0 0
    %273 = vmatpush1.bf16.msra.mxu0 0
    %274 = vmatprep.subr.bf16.mxu0 0
    %275 = vmatpush1.bf16.msra.mxu0 0
    %276 = vmatprep.subr.bf16.mxu0 0
    %277 = vmatpush1.bf16.msra.mxu0 0
    %278 = vmatprep.mubr.bf16.mxu0 0
    %279 = vmatmul.mubr.bf16.gmra.mrb[0].mxu0 %v189
    %v280 = vpop.f32.mrb[0].mxu0
    %v281 = vadd.f32 %v197, %v280
    %v282 = vpop.f32.mrb[0].mxu0
    %v283 = vpop.f32.mrb[0].mxu0
    %v284 = vpop.f32.mrb[0].mxu0
    %285 = vdwg.mxu0
    %vm286 = vcmask 523264
    %v287 = vsel %vm286, %v281, 0.0
    %v288 = vrot.slane %v287, 4
    %v289 = vadd.f32 %v287, %v288
    %v290 = vrot.slane %v289, 2
    %v291 = vadd.f32 %v289, %v290
    %v292 = vrot.slane %v291, 1
    %v293 = vadd.f32 %v291, %v292
    %v294 = vmul.f32 %v281, %v281
    %v295 = vsel %vm286, %v294, 0.0
    %v296 = vrot.slane %v295, 4
    %v297 = vadd.f32 %v295, %v296
    %v298 = vrot.slane %v297, 2
    %v299 = vadd.f32 %v297, %v298
    %v300 = vrot.slane %v299, 1
    %v301 = vadd.f32 %v299, %v300
    %v302 = vmul.f32 %v293, 0.125
    %v303 = vmul.f32 %v301, 0.125
    %v304 = vmul.f32 %v302, %v302
    %v305 = vsub.f32 %v303, %v304
    %v306 = vadd.f32 %v305, 1e-05
    %v307 = vrsqrt.pop %v306
    %v308 = vmul.f32 %v192, %v307
    %v309 = vmul.f32 %v302, %v308
    %v310 = vsub.f32 %v193, %v309
    %v311 = vlaneseq
    %v312 = vshrl.u32 %v311, 7
    %v313 = vsub.s32 0, %v312
    %v314 = vrot.slane %v308, %v313
    %v315 = vmul.f32 %v281, %v314
    %v316 = vlaneseq
    %v317 = vshrl.u32 %v316, 7
    %v318 = vsub.s32 0, %v317
    %v319 = vrot.slane %v310, %v318
    %v320 = vadd.f32 %v315, %v319
    %v321 = vmax.f32 %v320, 0.0
    %s322 = scalar_lea.vmem [#allocation6], 64
    %v323 = vld [vmem:[%s322] sm:$0xf]
    %v324 = vld [vmem:[%s322 + $0x4] sm:$0xf]
    %v325 = vld [vmem:[%s322 + $0x8] sm:$0xf]
    %v326 = vld [vmem:[%s322 + $0xc] sm:$0xf]
    %v327 = vld [vmem:[%s322 + $0x10] sm:$0xf]
    %v328 = vld [vmem:[%s322 + $0x14] sm:$0xf]
    %v329 = vld [vmem:[%s322 + $0x18] sm:$0xf]
    %v330 = vld [vmem:[%s322 + $0x1c] sm:$0xf]
    %v331 = vpack.c.bf16 %v321, %v321
    %s332 = scalar_lea.vmem [#allocation7], 16
    %v333 = vld [vmem:[%s332] sm:$0x1]
    %v334 = vld [vmem:[%s332 + $0x1] sm:$0x1]
    %v335 = vld [vmem:[%s332 + $0x2] sm:$0x1]
    %v336 = vlaneseq
    %v337 = vshrl.u32 %v336, 7
    %v338 = vsub.s32 0, %v337
    %v339 = vrot.slane %v333, %v338
    %v348 = vunpack.c.l.b16 %v323
    %v349 = vunpack.c.l.b16 %v324
    %v350 = vunpack.c.l.b16 %v325
    %v351 = vunpack.c.l.b16 %v326
    %v352 = vunpack.c.l.b16 %v327
    %v353 = vunpack.c.l.b16 %v328
    %v354 = vunpack.c.l.b16 %v329
    %v355 = vunpack.c.l.b16 %v330
    %v356 = vpack.c.b16 %v349, %v348
    %v357 = vpack.c.b16 %v351, %v350
    %v358 = vpack.c.b16 %v353, %v352
    %v359 = vpack.c.b16 %v355, %v354
    %v365 = vsel %vm286, %v331, 0
    %367 = vmatprep.subr.bf16.mxu0 0
    %368 = vmatpush1.bf16.msra.mxu0 %v356
    %369 = vmatprep.subr.bf16.mxu0 0
    %370 = vmatpush1.bf16.msra.mxu0 %v357
    %371 = vmatprep.subr.bf16.mxu0 0
    %372 = vmatpush1.bf16.msra.mxu0 %v358
    %373 = vmatprep.subr.bf16.mxu0 0
    %374 = vmatpush1.bf16.msra.mxu0 %v359
    %375 = vmatprep.subr.bf16.mxu0 0
    %376 = vmatpush1.bf16.msra.mxu0 0
    %377 = vmatprep.subr.bf16.mxu0 0
    %378 = vmatpush1.bf16.msra.mxu0 0
    %379 = vmatprep.subr.bf16.mxu0 0
    %380 = vmatpush1.bf16.msra.mxu0 0
    %381 = vmatprep.subr.bf16.mxu0 0
    %382 = vmatpush1.bf16.msra.mxu0 0
    %383 = vmatprep.subr.bf16.mxu0 0
    %384 = vmatpush1.bf16.msra.mxu0 0
    %385 = vmatprep.subr.bf16.mxu0 0
    %386 = vmatpush1.bf16.msra.mxu0 0
    %387 = vmatprep.subr.bf16.mxu0 0
    %388 = vmatpush1.bf16.msra.mxu0 0
    %389 = vmatprep.subr.bf16.mxu0 0
    %390 = vmatpush1.bf16.msra.mxu0 0
    %391 = vmatprep.subr.bf16.mxu0 0
    %392 = vmatpush1.bf16.msra.mxu0 0
    %393 = vmatprep.subr.bf16.mxu0 0
    %394 = vmatpush1.bf16.msra.mxu0 0
    %395 = vmatprep.subr.bf16.mxu0 0
    %396 = vmatpush1.bf16.msra.mxu0 0
    %397 = vmatprep.subr.bf16.mxu0 0
    %398 = vmatpush1.bf16.msra.mxu0 0
    %399 = vmatprep.mubr.bf16.mxu0 0
    %400 = vmatmul.mubr.bf16.gmra.mrb[0].mxu0 %v365
    %v401 = vpop.f32.mrb[0].mxu0
    %v402 = vadd.f32 %v339, %v401
    %v403 = vpop.f32.mrb[0].mxu0
    %v404 = vpop.f32.mrb[0].mxu0
    %v405 = vpop.f32.mrb[0].mxu0
    %406 = vdwg.mxu0
    %v407 = vsel %vm96, %v402, 0.0
    %v408 = vrot.slane %v407, 4
    %v409 = vadd.f32 %v407, %v408
    %v410 = vrot.slane %v409, 2
    %v411 = vadd.f32 %v409, %v410
    %v412 = vrot.slane %v411, 1
    %v413 = vadd.f32 %v411, %v412
    %v414 = vmul.f32 %v402, %v402
    %v415 = vsel %vm96, %v414, 0.0
    %v416 = vrot.slane %v415, 4
    %v417 = vadd.f32 %v415, %v416
    %v418 = vrot.slane %v417, 2
    %v419 = vadd.f32 %v417, %v418
    %v420 = vrot.slane %v419, 1
    %v421 = vadd.f32 %v419, %v420
    %v422 = vmul.f32 %v413, 0.125
    %v423 = vmul.f32 %v421, 0.125
    %v424 = vmul.f32 %v422, %v422
    %v425 = vsub.f32 %v423, %v424
    %v426 = vadd.f32 %v425, 1e-05
    %v427 = vrsqrt.pop %v426
    %v428 = vmul.f32 %v334, %v427
    %v429 = vmul.f32 %v422, %v428
    %v430 = vsub.f32 %v335, %v429
    %v431 = vlaneseq
    %v432 = vshrl.u32 %v431, 7
    %v433 = vsub.s32 0, %v432
    %v434 = vrot.slane %v428, %v433
    %v435 = vmul.f32 %v402, %v434
    %v436 = vlaneseq
    %v437 = vshrl.u32 %v436, 7
    %v438 = vsub.s32 0, %v437
    %v439 = vrot.slane %v430, %v438
    %v440 = vadd.f32 %v435, %v439
    %v441 = vmax.f32 %v440, 0.0
    %s442 = scalar_lea.vmem [#allocation6], 128
    %v443 = vld [vmem:[%s442] sm:$0xf]
    %v444 = vld [vmem:[%s442 + $0x4] sm:$0xf]
    %v445 = vld [vmem:[%s442 + $0x8] sm:$0xf]
    %v446 = vld [vmem:[%s442 + $0xc] sm:$0xf]
    %v447 = vpack.c.bf16 %v441, %v441
    %s448 = scalar_lea.vmem [#allocation7], 24
    %v449 = vld [vmem:[%s448] sm:$0x1]
    %v450 = vld [vmem:[%s448 + $0x1] sm:$0x1]
    %v451 = vld [vmem:[%s448 + $0x2] sm:$0x1]
    %v452 = vlaneseq
    %v453 = vshrl.u32 %v452, 7
    %v454 = vsub.s32 0, %v453
    %v455 = vrot.slane %v449, %v454
    %v460 = vunpack.c.l.b16 %v443
    %v461 = vunpack.c.l.b16 %v444
    %v462 = vunpack.c.l.b16 %v445
    %v463 = vunpack.c.l.b16 %v446
    %v464 = vpack.c.b16 %v461, %v460
    %v465 = vpack.c.b16 %v463, %v462
    %v469 = vsel %vm96, %v447, 0
    %471 = vmatprep.subr.bf16.mxu0 0
    %472 = vmatpush1.bf16.msra.mxu0 %v464
    %473 = vmatprep.subr.bf16.mxu0 0
    %474 = vmatpush1.bf16.msra.mxu0 %v465
    %475 = vmatprep.subr.bf16.mxu0 0
    %476 = vmatpush1.bf16.msra.mxu0 0
    %477 = vmatprep.subr.bf16.mxu0 0
    %478 = vmatpush1.bf16.msra.mxu0 0
    %479 = vmatprep.subr.bf16.mxu0 0
    %480 = vmatpush1.bf16.msra.mxu0 0
    %481 = vmatprep.subr.bf16.mxu0 0
    %482 = vmatpush1.bf16.msra.mxu0 0
    %483 = vmatprep.subr.bf16.mxu0 0
    %484 = vmatpush1.bf16.msra.mxu0 0
    %485 = vmatprep.subr.bf16.mxu0 0
    %486 = vmatpush1.bf16.msra.mxu0 0
    %487 = vmatprep.subr.bf16.mxu0 0
    %488 = vmatpush1.bf16.msra.mxu0 0
    %489 = vmatprep.subr.bf16.mxu0 0
    %490 = vmatpush1.bf16.msra.mxu0 0
    %491 = vmatprep.subr.bf16.mxu0 0
    %492 = vmatpush1.bf16.msra.mxu0 0
    %493 = vmatprep.subr.bf16.mxu0 0
    %494 = vmatpush1.bf16.msra.mxu0 0
    %495 = vmatprep.subr.bf16.mxu0 0
    %496 = vmatpush1.bf16.msra.mxu0 0
    %497 = vmatprep.subr.bf16.mxu0 0
    %498 = vmatpush1.bf16.msra.mxu0 0
    %499 = vmatprep.subr.bf16.mxu0 0
    %500 = vmatpush1.bf16.msra.mxu0 0
    %501 = vmatprep.subr.bf16.mxu0 0
    %502 = vmatpush1.bf16.msra.mxu0 0
    %503 = vmatprep.mubr.bf16.mxu0 0
    %504 = vmatmul.mubr.bf16.gmra.mrb[0].mxu0 %v469
    %v505 = vpop.f32.mrb[0].mxu0
    %v506 = vadd.f32 %v455, %v505
    %v507 = vpop.f32.mrb[0].mxu0
    %v508 = vpop.f32.mrb[0].mxu0
    %v509 = vpop.f32.mrb[0].mxu0
    %510 = vdwg.mxu0
    %vm511 = vcmask 130048
    %v512 = vsel %vm511, %v506, 0.0
    %v513 = vrot.slane %v512, 4
    %v514 = vadd.f32 %v512, %v513
    %v515 = vrot.slane %v514, 2
    %v516 = vadd.f32 %v514, %v515
    %v517 = vrot.slane %v516, 1
    %v518 = vadd.f32 %v516, %v517
    %v519 = vmul.f32 %v506, %v506
    %v520 = vsel %vm511, %v519, 0.0
    %v521 = vrot.slane %v520, 4
    %v522 = vadd.f32 %v520, %v521
    %v523 = vrot.slane %v522, 2
    %v524 = vadd.f32 %v522, %v523
    %v525 = vrot.slane %v524, 1
    %v526 = vadd.f32 %v524, %v525
    %v527 = vmul.f32 %v518, 0.125
    %v528 = vmul.f32 %v526, 0.125
    %v529 = vmul.f32 %v527, %v527
    %v530 = vsub.f32 %v528, %v529
    %v531 = vadd.f32 %v530, 1e-05
    %v532 = vrsqrt.pop %v531
    %v533 = vmul.f32 %v450, %v532
    %v534 = vmul.f32 %v527, %v533
    %v535 = vsub.f32 %v451, %v534
    %v536 = vlaneseq
    %v537 = vshrl.u32 %v536, 7
    %v538 = vsub.s32 0, %v537
    %v539 = vrot.slane %v533, %v538
    %v540 = vmul.f32 %v506, %v539
    %v541 = vlaneseq
    %v542 = vshrl.u32 %v541, 7
    %v543 = vsub.s32 0, %v542
    %v544 = vrot.slane %v535, %v543
    %v545 = vadd.f32 %v540, %v544
    %v546 = vmax.f32 %v545, 0.0
    %s547 = scalar_lea.vmem [#allocation7], 32
    %v548 = vld [vmem:[%s547 + $0x1] sm:$0x1]
    %v549 = vld [vmem:[%s547] sm:$0x1]
    %v550 = vlaneseq
    %v551 = vshrl.u32 %v550, 7
    %v552 = vsub.s32 0, %v551
    %v553 = vrot.slane %v548, %v552
    %v554 = vmul.f32 %v546, %v553
    %v555 = vsel %vm511, %v554, 0.0
    %556 = vadd.xlane.f32.xlu0 %v555
    %v557 = vpop.xlane.xlu0 %556
    %v558 = vlaneseq
    %v559 = vshrl.u32 %v558, 7
    %v560 = vsub.s32 0, %v559
    %v561 = vrot.slane %v549, %v560
    %v562 = vadd.f32 %v557, %v561
    %v563 = vmax.f32 %v562, 0.0
    %vm564 = vcmask 7168
    %565 = vst.msk [vmem:[%s4] sm:$0xff] %vm564, %v563
    // Predicated region
    $region34: #{mlp_forward.1} parent=1 // pred_check
      _
    $region35: #{mlp_forward.1} parent=1 // pred_check_branch
      %567 = sbr.rel (0) target = $region37
    $region36: #{mlp_forward.1} parent=1 // pred_region
      _
    $region37: #{mlp_forward.1} parent=1 // pred_fallthru
      _
    // Predicated region
    $region38: #{mlp_forward.1} parent=1 // pred_check
      _
    $region39: #{mlp_forward.1} parent=1 // pred_check_branch
      %569 = sbr.rel (0) target = $region41
    $region40: #{mlp_forward.1} parent=1 // pred_region
      _
    $region41: #{mlp_forward.1} parent=1 // pred_fallthru
      _
    %570 = vsyncpa [#allocation3], 1
    %571 = vsyncpa [#allocation5], 1
    %572 = vsyncpa [#allocation8], 1

</llo_original>
